<compile_context>
chip_gen: v7x
topology: tpu7x:2x2x1
jax: 0.10.0
libtpu: 0.0.40
codegen_flags: <defaults>
</compile_context>

<pallas_src>
import functools

import jax
import jax.numpy as jnp
from jax import lax
from jax.experimental import pallas as pl
from jax.experimental.pallas import tpu as pltpu


def _mha_residual_kernel(xq_ref, xkv_ref, wq_ref, bq_ref, wk_ref, bk_ref,
                         wv_ref, bv_ref, wp_ref, bp_ref, o_ref, acc_ref,
                         *, inv_scale: float):
    h = pl.program_id(2)

    xq = xq_ref[...].astype(jnp.float32)     # (TQ, E)  queries + residual
    xkv = xkv_ref[...].astype(jnp.float32)   # (N,  E)  keys / values source

    @pl.when(h == 0)
    def _init():
        # Seed the accumulator with the residual and the projection bias.
        acc_ref[...] = xq + bp_ref[...]

    # Per-head projections.  Weight slices arrive as (d, E) blocks and are
    # contracted on their last dim (transposed-B form -> no in-kernel .T).
    dn_bt = (((1,), (1,)), ((), ()))
    q = lax.dot_general(xq, wq_ref[...], dn_bt,
                        preferred_element_type=jnp.float32) + bq_ref[...]
    k = lax.dot_general(xkv, wk_ref[...], dn_bt,
                        preferred_element_type=jnp.float32) + bk_ref[...]
    v = lax.dot_general(xkv, wv_ref[...], dn_bt,
                        preferred_element_type=jnp.float32) + bv_ref[...]

    # energy = (Q / sqrt(E)) @ K^T : scale folded into the small Q operand.
    q = q * jnp.float32(inv_scale)
    energy = lax.dot_general(q, k, dn_bt,
                             preferred_element_type=jnp.float32)    # (TQ, N)

    # Numerically-stable softmax along keys; reciprocal goes to the EUP slot.
    m = jnp.max(energy, axis=-1, keepdims=True)
    p = jnp.exp(energy - m)
    s = jnp.sum(p, axis=-1, keepdims=True)
    att = p * pl.reciprocal(s, approx=True)
    # TODO(synk): attention dropout is identity (eval mode); mask is None.

    ctx = jnp.dot(att, v, preferred_element_type=jnp.float32)       # (TQ, d)

    # concat_h(ctx_h) @ Wp  ==  sum_h ctx_h @ Wp[h*d:(h+1)*d, :]
    acc_ref[...] += jnp.dot(ctx, wp_ref[...],
                            preferred_element_type=jnp.float32)     # (TQ, E)

    @pl.when(h == pl.num_programs(2) - 1)
    def _finish():
        o_ref[...] = acc_ref[...].astype(o_ref.dtype)


def residual_mha(x, wq, bq, wk, bk, wv, bv, wp, bp, *, num_heads: int):
    """out = x + MHA(x).

    x: (B, N, E).  Weights are stored (in, out) so y = x @ W + b (transposed
    w.r.t. torch.nn.Linear.weight); biases are (E,).
    """
    B, N, E = x.shape
    H = num_heads
    assert E % H == 0, "emb_size must be divisible by num_heads"
    d = E // H

    # Query tile: lane/sublane friendly tiles when the sequence allows it.
    tq = 128 if N % 128 == 0 else N
    n_q_tiles = N // tq

    # Head-sliced weight layouts, prepared once outside the kernel:
    #   wq/wk/wv: (E_in, H*d) -> (H, d, E_in)   (contracted on last dim)
    #   wp:       (H*d, E_out) -> (H, d, E_out)
    #   bq/bk/bv: (H*d,)       -> (H, 1, d)
    def split_in(w):
        return jnp.transpose(w.reshape(E, H, d), (1, 2, 0))

    wq_h, wk_h, wv_h = split_in(wq), split_in(wk), split_in(wv)
    wp_h = wp.reshape(H, d, E)
    bq_h = bq.reshape(H, 1, d)
    bk_h = bk.reshape(H, 1, d)
    bv_h = bv.reshape(H, 1, d)
    bp_2 = bp.reshape(1, E)

    xq_spec = pl.BlockSpec((None, tq, E), lambda b, qi, h: (b, qi, 0))
    xkv_spec = pl.BlockSpec((None, N, E), lambda b, qi, h: (b, 0, 0))
    w_in_spec = pl.BlockSpec((None, d, E), lambda b, qi, h: (h, 0, 0))
    b_in_spec = pl.BlockSpec((None, 1, d), lambda b, qi, h: (h, 0, 0))
    wp_spec = pl.BlockSpec((None, d, E), lambda b, qi, h: (h, 0, 0))
    bp_spec = pl.BlockSpec((1, E), lambda b, qi, h: (0, 0))
    out_spec = pl.BlockSpec((None, tq, E), lambda b, qi, h: (b, qi, 0))

    kernel = functools.partial(_mha_residual_kernel,
                               inv_scale=1.0 / (float(E) ** 0.5))

    # Rough working set (bytes): double-buffered blocks + f32 intermediates.
    blk_bytes = 4 * (tq * E + N * E + tq * E            # x_q, x_kv, out
                     + 4 * d * E + 3 * d + E)           # weight/bias slices
    live_bytes = 4 * (tq * E                            # accumulator
                      + tq * d + 2 * N * d              # q, k, v
                      + 2 * tq * N + tq * d + tq * E)   # energy/att, ctx, proj
    vmem_limit = int(min(64 * 1024 * 1024,
                         max(16 * 1024 * 1024, 4 * blk_bytes + 2 * live_bytes)))

    grid = (B, n_q_tiles, H)
    n_steps = B * n_q_tiles * H
    flops_per_step = 2 * (tq * E * d + 2 * N * E * d    # q, k, v projections
                          + 2 * tq * N * d              # energy, att@v
                          + tq * d * E)                 # output projection
    cost = pl.CostEstimate(
        flops=flops_per_step * n_steps,
        transcendentals=tq * N * n_steps,
        bytes_accessed=4 * (3 * B * N * E + 4 * E * E + 4 * E))

    return pl.pallas_call(
        kernel,
        out_shape=jax.ShapeDtypeStruct((B, N, E), x.dtype),
        grid_spec=pltpu.PrefetchScalarGridSpec(
            num_scalar_prefetch=0,
            grid=grid,
            in_specs=[xq_spec, xkv_spec,
                      w_in_spec, b_in_spec,     # Q
                      w_in_spec, b_in_spec,     # K
                      w_in_spec, b_in_spec,     # V
                      wp_spec, bp_spec],        # output projection
            out_specs=out_spec,
            scratch_shapes=[pltpu.VMEM((tq, E), jnp.float32)],
        ),
        compiler_params=pltpu.CompilerParams(
            dimension_semantics=("parallel", "parallel", "arbitrary"),
            vmem_limit_bytes=vmem_limit),
        cost_estimate=cost,
    )(x, x, wq_h, bq_h, wk_h, bk_h, wv_h, bv_h, wp_h, bp_2)


def _reference(x, wq, bq, wk, bk, wv, bv, wp, bp, *, num_heads):
    B, N, E = x.shape
    d = E // num_heads
    q = (x @ wq + bq).reshape(B, N, num_heads, d).transpose(0, 2, 1, 3)
    k = (x @ wk + bk).reshape(B, N, num_heads, d).transpose(0, 2, 1, 3)
    v = (x @ wv + bv).reshape(B, N, num_heads, d).transpose(0, 2, 1, 3)
    energy = jnp.einsum('bhqd,bhkd->bhqk', q, k) / (E ** 0.5)
    att = jax.nn.softmax(energy, axis=-1)
    out = jnp.einsum('bhqk,bhkd->bhqd', att, v)
    out = out.transpose(0, 2, 1, 3).reshape(B, N, E)
    return x + out @ wp + bp


if __name__ == "__main__":
    B, N, E, H = 2, 8, 32, 4

    key = jax.random.PRNGKey(0)
    keys = jax.random.split(key, 9)
    scale = 0.1
    x = jax.random.normal(keys[0], (B, N, E), dtype=jnp.float32)
    wq = scale * jax.random.normal(keys[1], (E, E), dtype=jnp.float32)
    wk = scale * jax.random.normal(keys[2], (E, E), dtype=jnp.float32)
    wv = scale * jax.random.normal(keys[3], (E, E), dtype=jnp.float32)
    wp = scale * jax.random.normal(keys[4], (E, E), dtype=jnp.float32)
    bq = scale * jax.random.normal(keys[5], (E,), dtype=jnp.float32)
    bk = scale * jax.random.normal(keys[6], (E,), dtype=jnp.float32)
    bv = scale * jax.random.normal(keys[7], (E,), dtype=jnp.float32)
    bp = scale * jax.random.normal(keys[8], (E,), dtype=jnp.float32)

    out = residual_mha(x, wq, bq, wk, bk, wv, bv, wp, bp, num_heads=H)
    out = jax.block_until_ready(out)

    ref = _reference(x, wq, bq, wk, bk, wv, bv, wp, bp, num_heads=H)
    assert jnp.allclose(out, ref, atol=2e-3, rtol=2e-3), "mismatch vs reference"

    print("KERNEL_OK")
</pallas_src>

<mosaic_0001>
module attributes {stable_mosaic.version = 11 : i64} {
  func.func @_mha_residual_kernel(%arg0: i32, %arg1: i32, %arg2: i32, %arg3: memref<1x8x32xf32, #tpu.memory_space<vmem>>, %arg4: memref<1x8x32xf32, #tpu.memory_space<vmem>>, %arg5: memref<1x8x32xf32, #tpu.memory_space<vmem>>, %arg6: memref<1x1x8xf32, #tpu.memory_space<vmem>>, %arg7: memref<1x8x32xf32, #tpu.memory_space<vmem>>, %arg8: memref<1x1x8xf32, #tpu.memory_space<vmem>>, %arg9: memref<1x8x32xf32, #tpu.memory_space<vmem>>, %arg10: memref<1x1x8xf32, #tpu.memory_space<vmem>>, %arg11: memref<1x8x32xf32, #tpu.memory_space<vmem>>, %arg12: memref<1x32xf32, #tpu.memory_space<vmem>>, %arg13: memref<1x8x32xf32, #tpu.memory_space<vmem>>, %arg14: memref<8x32xf32, #tpu.memory_space<vmem>>) attributes {dimension_semantics = [#tpu.dimension_semantics<parallel>, #tpu.dimension_semantics<parallel>, #tpu.dimension_semantics<arbitrary>], iteration_bounds = array<i64: 2, 1, 4>, scalar_prefetch = 0 : i64, scratch_operands = 1 : i64, tpu.core_type = #tpu.core_type<tc>, window_params = [{transform_indices = @transform_0, window_bounds = array<i64: 1, 8, 32>}, {transform_indices = @transform_1, window_bounds = array<i64: 1, 8, 32>}, {transform_indices = @transform_2, window_bounds = array<i64: 1, 8, 32>}, {transform_indices = @transform_3, window_bounds = array<i64: 1, 1, 8>}, {transform_indices = @transform_4, window_bounds = array<i64: 1, 8, 32>}, {transform_indices = @transform_5, window_bounds = array<i64: 1, 1, 8>}, {transform_indices = @transform_6, window_bounds = array<i64: 1, 8, 32>}, {transform_indices = @transform_7, window_bounds = array<i64: 1, 1, 8>}, {transform_indices = @transform_8, window_bounds = array<i64: 1, 8, 32>}, {pipeline_mode = #tpu.pipeline_mode<synchronous>, transform_indices = @transform_9, window_bounds = array<i64: 1, 32>}, {transform_indices = @transform_10, window_bounds = array<i64: 1, 8, 32>}]} {
    %c0 = arith.constant 0 : index
    %c0_0 = arith.constant 0 : index
    %c0_1 = arith.constant 0 : index
    %0 = vector.load %arg3[%c0, %c0_0, %c0_1] : memref<1x8x32xf32, #tpu.memory_space<vmem>>, vector<1x8x32xf32>
    %1 = vector.shape_cast %0 : vector<1x8x32xf32> to vector<8x32xf32>
    %c0_2 = arith.constant 0 : index
    %c0_3 = arith.constant 0 : index
    %c0_4 = arith.constant 0 : index
    %2 = vector.load %arg4[%c0_2, %c0_3, %c0_4] : memref<1x8x32xf32, #tpu.memory_space<vmem>>, vector<1x8x32xf32>
    %3 = vector.shape_cast %2 : vector<1x8x32xf32> to vector<8x32xf32>
    %c0_i32 = arith.constant 0 : i32
    %4 = arith.cmpi eq, %arg2, %c0_i32 : i32
    %5 = arith.extui %4 : i1 to i32
    %c0_i32_5 = arith.constant 0 : i32
    %6 = arith.cmpi ne, %5, %c0_i32_5 : i32
    scf.if %6 {
      %c0_40 = arith.constant 0 : index
      %c0_41 = arith.constant 0 : index
      %51 = vector.load %arg12[%c0_40, %c0_41] : memref<1x32xf32, #tpu.memory_space<vmem>>, vector<1x32xf32>
      %52 = vector.broadcast %51 : vector<1x32xf32> to vector<8x32xf32>
      %53 = arith.addf %1, %52 : vector<8x32xf32>
      %c0_42 = arith.constant 0 : index
      %c0_43 = arith.constant 0 : index
      %54 = vector.load %arg14[%c0_42, %c0_43] : memref<8x32xf32, #tpu.memory_space<vmem>>, vector<8x32xf32>
      tpu.vector_store %arg14[%c0_42, %c0_43], %53 {strides = array<i32>} : memref<8x32xf32, #tpu.memory_space<vmem>>, vector<8x32xf32>,
    } else {
    }
    %c0_6 = arith.constant 0 : index
    %c0_7 = arith.constant 0 : index
    %c0_8 = arith.constant 0 : index
    %7 = vector.load %arg5[%c0_6, %c0_7, %c0_8] : memref<1x8x32xf32, #tpu.memory_space<vmem>>, vector<1x8x32xf32>
    %8 = vector.shape_cast %7 : vector<1x8x32xf32> to vector<8x32xf32>
    %cst = arith.constant dense<0.000000e+00> : vector<8x8xf32>
    %9 = tpu.matmul %1, %8, %cst {dimension_numbers = #tpu.dot_dimension_numbers<[1], [1], [0], [0], [0, 0, 1, 0], [], []>} : vector<8x32xf32>, vector<8x32xf32>, vector<8x8xf32> -> vector<8x8xf32>
    %c0_9 = arith.constant 0 : index
    %c0_10 = arith.constant 0 : index
    %c0_11 = arith.constant 0 : index
    %10 = vector.load %arg6[%c0_9, %c0_10, %c0_11] : memref<1x1x8xf32, #tpu.memory_space<vmem>>, vector<1x1x8xf32>
    %11 = vector.shape_cast %10 : vector<1x1x8xf32> to vector<1x8xf32>
    %12 = vector.broadcast %11 : vector<1x8xf32> to vector<8x8xf32>
    %13 = arith.addf %9, %12 : vector<8x8xf32>
    %c0_12 = arith.constant 0 : index
    %c0_13 = arith.constant 0 : index
    %c0_14 = arith.constant 0 : index
    %14 = vector.load %arg7[%c0_12, %c0_13, %c0_14] : memref<1x8x32xf32, #tpu.memory_space<vmem>>, vector<1x8x32xf32>
    %15 = vector.shape_cast %14 : vector<1x8x32xf32> to vector<8x32xf32>
    %cst_15 = arith.constant dense<0.000000e+00> : vector<8x8xf32>
    %16 = tpu.matmul %3, %15, %cst_15 {dimension_numbers = #tpu.dot_dimension_numbers<[1], [1], [0], [0], [0, 0, 1, 0], [], []>} : vector<8x32xf32>, vector<8x32xf32>, vector<8x8xf32> -> vector<8x8xf32>
    %c0_16 = arith.constant 0 : index
    %c0_17 = arith.constant 0 : index
    %c0_18 = arith.constant 0 : index
    %17 = vector.load %arg8[%c0_16, %c0_17, %c0_18] : memref<1x1x8xf32, #tpu.memory_space<vmem>>, vector<1x1x8xf32>
    %18 = vector.shape_cast %17 : vector<1x1x8xf32> to vector<1x8xf32>
    %19 = vector.broadcast %18 : vector<1x8xf32> to vector<8x8xf32>
    %20 = arith.addf %16, %19 : vector<8x8xf32>
    %c0_19 = arith.constant 0 : index
    %c0_20 = arith.constant 0 : index
    %c0_21 = arith.constant 0 : index
    %21 = vector.load %arg9[%c0_19, %c0_20, %c0_21] : memref<1x8x32xf32, #tpu.memory_space<vmem>>, vector<1x8x32xf32>
    %22 = vector.shape_cast %21 : vector<1x8x32xf32> to vector<8x32xf32>
    %cst_22 = arith.constant dense<0.000000e+00> : vector<8x8xf32>
    %23 = tpu.matmul %3, %22, %cst_22 {dimension_numbers = #tpu.dot_dimension_numbers<[1], [1], [0], [0], [0, 0, 1, 0], [], []>} : vector<8x32xf32>, vector<8x32xf32>, vector<8x8xf32> -> vector<8x8xf32>
    %c0_23 = arith.constant 0 : index
    %c0_24 = arith.constant 0 : index
    %c0_25 = arith.constant 0 : index
    %24 = vector.load %arg10[%c0_23, %c0_24, %c0_25] : memref<1x1x8xf32, #tpu.memory_space<vmem>>, vector<1x1x8xf32>
    %25 = vector.shape_cast %24 : vector<1x1x8xf32> to vector<1x8xf32>
    %26 = vector.broadcast %25 : vector<1x8xf32> to vector<8x8xf32>
    %27 = arith.addf %23, %26 : vector<8x8xf32>
    %cst_26 = arith.constant 0.176776692 : f32
    %28 = vector.broadcast %cst_26 : f32 to vector<8x8xf32>
    %29 = arith.mulf %13, %28 : vector<8x8xf32>
    %cst_27 = arith.constant dense<0.000000e+00> : vector<8x8xf32>
    %30 = tpu.matmul %29, %20, %cst_27 {dimension_numbers = #tpu.dot_dimension_numbers<[1], [1], [0], [0], [0, 0, 1, 0], [], []>} : vector<8x8xf32>, vector<8x8xf32>, vector<8x8xf32> -> vector<8x8xf32>
    %cst_28 = arith.constant dense<0xFF800000> : vector<8xf32>
    %31 = vector.multi_reduction <maximumf>, %30, %cst_28 [1] : vector<8x8xf32> to vector<8xf32>
    %32 = vector.shape_cast %31 : vector<8xf32> to vector<8x1xf32>
    %33 = vector.broadcast %32 : vector<8x1xf32> to vector<8x8xf32>
    %34 = arith.subf %30, %33 : vector<8x8xf32>
    %35 = math.exp %34 : vector<8x8xf32>
    %cst_29 = arith.constant dense<0.000000e+00> : vector<8xf32>
    %36 = vector.multi_reduction <add>, %35, %cst_29 [1] : vector<8x8xf32> to vector<8xf32>
    %37 = vector.shape_cast %36 : vector<8xf32> to vector<8x1xf32>
    %38 = tpu.reciprocal %37 {approx = true} : vector<8x1xf32> -> vector<8x1xf32>
    %39 = vector.broadcast %38 : vector<8x1xf32> to vector<8x8xf32>
    %40 = arith.mulf %35, %39 : vector<8x8xf32>
    %cst_30 = arith.constant dense<0.000000e+00> : vector<8x8xf32>
    %41 = tpu.matmul %40, %27, %cst_30 {dimension_numbers = #tpu.dot_dimension_numbers<[1], [0], [0], [1], [0, 0, 1, 1], [], []>} : vector<8x8xf32>, vector<8x8xf32>, vector<8x8xf32> -> vector<8x8xf32>
    %c0_31 = arith.constant 0 : index
    %c0_32 = arith.constant 0 : index
    %42 = vector.load %arg14[%c0_31, %c0_32] : memref<8x32xf32, #tpu.memory_space<vmem>>, vector<8x32xf32>
    %c0_33 = arith.constant 0 : index
    %c0_34 = arith.constant 0 : index
    %c0_35 = arith.constant 0 : index
    %43 = vector.load %arg11[%c0_33, %c0_34, %c0_35] : memref<1x8x32xf32, #tpu.memory_space<vmem>>, vector<1x8x32xf32>
    %44 = vector.shape_cast %43 : vector<1x8x32xf32> to vector<8x32xf32>
    %cst_36 = arith.constant dense<0.000000e+00> : vector<8x32xf32>
    %45 = tpu.matmul %41, %44, %cst_36 {dimension_numbers = #tpu.dot_dimension_numbers<[1], [0], [0], [1], [0, 0, 1, 1], [], []>} : vector<8x8xf32>, vector<8x32xf32>, vector<8x32xf32> -> vector<8x32xf32>
    %46 = arith.addf %42, %45 : vector<8x32xf32>
    %c0_37 = arith.constant 0 : index
    %c0_38 = arith.constant 0 : index
    %47 = vector.load %arg14[%c0_37, %c0_38] : memref<8x32xf32, #tpu.memory_space<vmem>>, vector<8x32xf32>
    tpu.vector_store %arg14[%c0_37, %c0_38], %46 {strides = array<i32>} : memref<8x32xf32, #tpu.memory_space<vmem>>, vector<8x32xf32>,
    %c3_i32 = arith.constant 3 : i32
    %48 = arith.cmpi eq, %arg2, %c3_i32 : i32
    %49 = arith.extui %48 : i1 to i32
    %c0_i32_39 = arith.constant 0 : i32
    %50 = arith.cmpi ne, %49, %c0_i32_39 : i32
    scf.if %50 {
      %c0_40 = arith.constant 0 : index
      %c0_41 = arith.constant 0 : index
      %51 = vector.load %arg14[%c0_40, %c0_41] : memref<8x32xf32, #tpu.memory_space<vmem>>, vector<8x32xf32>
      %c0_42 = arith.constant 0 : index
      %c0_43 = arith.constant 0 : index
      %c0_44 = arith.constant 0 : index
      %52 = vector.load %arg13[%c0_42, %c0_43, %c0_44] : memref<1x8x32xf32, #tpu.memory_space<vmem>>, vector<1x8x32xf32>
      %53 = vector.shape_cast %52 : vector<1x8x32xf32> to vector<8x32xf32>
      %54 = vector.shape_cast %51 : vector<8x32xf32> to vector<1x8x32xf32>
      tpu.vector_store %arg13[%c0_42, %c0_43, %c0_44], %54 {strides = array<i32>} : memref<1x8x32xf32, #tpu.memory_space<vmem>>, vector<1x8x32xf32>,
    } else {
    }
    return
  }
  func.func @transform_0(%arg0: i32, %arg1: i32, %arg2: i32) -> (i32, i32, i32) {
    %c0_i32 = arith.constant 0 : i32
    %c0_i32_0 = arith.constant 0 : i32
    return %arg0, %arg1, %c0_i32 : i32, i32, i32
  }
  func.func @transform_1(%arg0: i32, %arg1: i32, %arg2: i32) -> (i32, i32, i32) {
    %c0_i32 = arith.constant 0 : i32
    %c0_i32_0 = arith.constant 0 : i32
    %c0_i32_1 = arith.constant 0 : i32
    return %arg0, %c0_i32, %c0_i32_0 : i32, i32, i32
  }
  func.func @transform_2(%arg0: i32, %arg1: i32, %arg2: i32) -> (i32, i32, i32) {
    %c0_i32 = arith.constant 0 : i32
    %c0_i32_0 = arith.constant 0 : i32
    %c0_i32_1 = arith.constant 0 : i32
    return %arg2, %c0_i32, %c0_i32_0 : i32, i32, i32
  }
  func.func @transform_3(%arg0: i32, %arg1: i32, %arg2: i32) -> (i32, i32, i32) {
    %c0_i32 = arith.constant 0 : i32
    %c0_i32_0 = arith.constant 0 : i32
    %c0_i32_1 = arith.constant 0 : i32
    return %arg2, %c0_i32, %c0_i32_0 : i32, i32, i32
  }
  func.func @transform_4(%arg0: i32, %arg1: i32, %arg2: i32) -> (i32, i32, i32) {
    %c0_i32 = arith.constant 0 : i32
    %c0_i32_0 = arith.constant 0 : i32
    %c0_i32_1 = arith.constant 0 : i32
    return %arg2, %c0_i32, %c0_i32_0 : i32, i32, i32
  }
  func.func @transform_5(%arg0: i32, %arg1: i32, %arg2: i32) -> (i32, i32, i32) {
    %c0_i32 = arith.constant 0 : i32
    %c0_i32_0 = arith.constant 0 : i32
    %c0_i32_1 = arith.constant 0 : i32
    return %arg2, %c0_i32, %c0_i32_0 : i32, i32, i32
  }
  func.func @transform_6(%arg0: i32, %arg1: i32, %arg2: i32) -> (i32, i32, i32) {
    %c0_i32 = arith.constant 0 : i32
    %c0_i32_0 = arith.constant 0 : i32
    %c0_i32_1 = arith.constant 0 : i32
    return %arg2, %c0_i32, %c0_i32_0 : i32, i32, i32
  }
  func.func @transform_7(%arg0: i32, %arg1: i32, %arg2: i32) -> (i32, i32, i32) {
    %c0_i32 = arith.constant 0 : i32
    %c0_i32_0 = arith.constant 0 : i32
    %c0_i32_1 = arith.constant 0 : i32
    return %arg2, %c0_i32, %c0_i32_0 : i32, i32, i32
  }
  func.func @transform_8(%arg0: i32, %arg1: i32, %arg2: i32) -> (i32, i32, i32) {
    %c0_i32 = arith.constant 0 : i32
    %c0_i32_0 = arith.constant 0 : i32
    %c0_i32_1 = arith.constant 0 : i32
    return %arg2, %c0_i32, %c0_i32_0 : i32, i32, i32
  }
  func.func @transform_9(%arg0: i32, %arg1: i32, %arg2: i32) -> (i32, i32) {
    %c0_i32 = arith.constant 0 : i32
    %c0_i32_0 = arith.constant 0 : i32
    %c0_i32_1 = arith.constant 0 : i32
    return %c0_i32, %c0_i32_0 : i32, i32
  }
  func.func @transform_10(%arg0: i32, %arg1: i32, %arg2: i32) -> (i32, i32, i32) {
    %c0_i32 = arith.constant 0 : i32
    %c0_i32_0 = arith.constant 0 : i32
    return %arg0, %arg1, %c0_i32 : i32, i32, i32
  }
}

</mosaic_0001>

<llo_original>
// kernel: tpu_custom_call.1
$region0: #{tpu_custom_call.1}
  #allocation0 [shape = 'u32[]', space=smem, size = 0x4, offset = 0x4, fixed_abs, tag = 'smem constant byte address 0x4 - core index']
  #allocation1 [shape = 'u32[144,128]{1,0:T(1,128)}', space=vmem, size = 0x12000, scoped, tag = 'internal scratch']
  #allocation2 [shape = 'f32[8,32]{1,0:T(8,128)}', space=vmem, size = 0x1000, scoped, tag = 'scratch operand']
  %s0 = inlined_call_operand.hbm [shape: f32[2,8,32], index: 0, kind: input, shape index: {}]
  %s1 = inlined_call_operand.hbm [shape: f32[2,8,32], index: 1, kind: input, shape index: {}]
  %s2 = inlined_call_operand.hbm [shape: f32[4,8,32], index: 2, kind: input, shape index: {}]
  %s3 = inlined_call_operand.vmem [shape: f32[4,1,8], index: 3, kind: input, shape index: {}]
  %s4 = inlined_call_operand.hbm [shape: f32[4,8,32], index: 4, kind: input, shape index: {}]
  %s5 = inlined_call_operand.vmem [shape: f32[4,1,8], index: 5, kind: input, shape index: {}]
  %s6 = inlined_call_operand.hbm [shape: f32[4,8,32], index: 6, kind: input, shape index: {}]
  %s7 = inlined_call_operand.vmem [shape: f32[4,1,8], index: 7, kind: input, shape index: {}]
  %s8 = inlined_call_operand.hbm [shape: f32[4,8,32], index: 8, kind: input, shape index: {}]
  %s9 = inlined_call_operand.vmem [shape: f32[1,32], index: 9, kind: input, shape index: {}]
  %s10 = inlined_call_operand.hbm [shape: f32[2,8,32], index: 10, kind: output, shape index: {}]
  %s11 = sld [smem:[#allocation0]]
  $region105: #{tpu_custom_call.1} parent=0
    _
  %s13 = ssub.s32 1, %s11
  %s14 = scalar_select 0, %s13, %s11
  $region1: #{tpu_custom_call.1} parent=0
    #allocation3 [shape = 'u8[8192]{0}', space=vmem, size = 0x2000, scoped, tag = 'input window, operand 0']
    #allocation4 [shape = 's32[2]{0}', space=sflag, size = 0x8, scoped, tag = 'scoped memory for tpu_custom_call.1']
    #allocation5 [shape = 's32[2]{0}', space=sflag, size = 0x8, scoped, tag = 'scoped memory for tpu_custom_call.1']
    #allocation6 [shape = 'u8[8192]{0}', space=vmem, size = 0x2000, scoped, tag = 'input window, operand 1']
    #allocation7 [shape = 's32[2]{0}', space=sflag, size = 0x8, scoped, tag = 'scoped memory for tpu_custom_call.1']
    #allocation8 [shape = 'u8[8192]{0}', space=vmem, size = 0x2000, scoped, tag = 'input window, operand 2']
    #allocation9 [shape = 'u8[8192]{0}', space=vmem, size = 0x2000, scoped, tag = 'input window, operand 4']
    #allocation10 [shape = 's32[2]{0}', space=sflag, size = 0x8, scoped, tag = 'scoped memory for tpu_custom_call.1']
    #allocation11 [shape = 'u8[8192]{0}', space=vmem, size = 0x2000, scoped, tag = 'input window, operand 6']
    #allocation12 [shape = 'u8[8192]{0}', space=vmem, size = 0x2000, scoped, tag = 'input window, operand 8']
    #allocation13 [shape = 's32[2]{0}', space=sflag, size = 0x8, scoped, tag = 'scoped memory for tpu_custom_call.1']
    #allocation14 [shape = 'u8[8192]{0}', space=vmem, size = 0x2000, scoped, tag = 'output window, operand 0']
    %15 = vsyncpa [#allocation4], 0
    %s16 = scalar_lea.sflag [#allocation4], 1
    %17 = vsyncpa %s16, 0
    %18 = vsyncpa [#allocation7], 0
    %s19 = scalar_lea.sflag [#allocation7], 1
    %20 = vsyncpa %s19, 0
    %21 = vsyncpa [#allocation10], 0
    %s22 = scalar_lea.sflag [#allocation10], 1
    %23 = vsyncpa %s22, 0
    %24 = vsyncpa [#allocation13], 0
    %s25 = scalar_lea.sflag [#allocation13], 1
    %26 = vsyncpa %s25, 0
    %27 = vsyncpa [#allocation5], 0
    %s28 = scalar_lea.sflag [#allocation5], 1
    %29 = vsyncpa %s28, 0
    loop: start=0, step=1, limit=10
    $region2: #{tpu_custom_call.1} parent=1 // loop_pre_header
      _
    $region3: #{tpu_custom_call.1} parent=1 // loop_header
      %s31 = sphi 0, %s35
      %p32 = scmp.ge.s32.totalorder %s31, 10
      %s38 = sphi 0, %s57
      %s39 = sphi 0, %s53
      %s40 = sphi 0, %s49
      %s41 = sphi 0, %s38
      %s42 = sphi 0, %s39
      %s43 = sphi 0, %s40
      %s44 = sphi 0, %s41
      %s45 = sphi 0, %s42
      %s46 = sphi 0, %s43
      %s62 = sphi 0, %s64
      %s65 = sphi 0, %s62
      %s66 = sphi 0, %s65
      %s82 = sphi 0, %s66
      %s88 = sphi 0, %s90
      %s91 = sphi 0, %s88
      %s92 = sphi 0, %s91
      %s108 = sphi 0, %s92
      %s114 = sphi 0, %s116
      %s117 = sphi 0, %s114
      %s118 = sphi 0, %s117
      %s134 = sphi 0, %s118
      %s140 = sphi 0, %s142
      %s143 = sphi 0, %s140
      %s144 = sphi 0, %s143
      %s160 = sphi 0, %s144
      %s166 = sphi 0, %s168
      %s169 = sphi 0, %s166
      %s170 = sphi 0, %s169
      %s186 = sphi 0, %s170
      %s192 = sphi 0, %s194
      %s195 = sphi 0, %s192
      %s196 = sphi 0, %s195
      %s212 = sphi 0, %s196
      %s218 = sphi 0, %s220
      %s221 = sphi 0, %s218
      %s222 = sphi 0, %s221
      %s238 = sphi 0, %s222
      %s244 = sphi 0, %s246
      %s247 = sphi 0, %s244
      %s248 = sphi 0, %s247
      %s264 = sphi 0, %s248
      %s270 = sphi 0, %s272
      %s273 = sphi 0, %s270
      %s274 = sphi 0, %s273
      %s290 = sphi 0, %s274
      %s294 = sphi 0, %s294
      %s296 = sphi 0, %s294
      %s297 = sphi 0, %s296
      %s311 = sphi 0, %s297
      %s319 = sphi 0, %s321
      %s322 = sphi 0, %s319
      %s323 = sphi 0, %s322
      %s339 = sphi 0, %s323
    $region4: #{tpu_custom_call.1} parent=1 // loop_header_branch
      %34 = sbr.rel (%p32) target = $region8
    $region5: #{tpu_custom_call.1} parent=1 // loop_body
      %s36 = ssub.s32 %s31, 1
      %s37 = ssub.s32 %s31, 2
      %s47 = sadd.s32 1, %s40
      %p48 = scmp.ge.s32.totalorder %s47, 4
      %s49 = scalar_select %p48, 0, %s47
      %s50 = sadd.s32 1, %s39
      %s51 = scalar_select %p48, %s50, %s39
      %p52 = scmp.ge.s32.totalorder %s51, 1
      %s53 = scalar_select %p52, 0, %s51
      %s54 = sadd.s32 1, %s38
      %s55 = scalar_select %p52, %s54, %s38
      %p56 = scmp.ge.s32.totalorder %s55, 2
      %s57 = scalar_select %p56, 0, %s55
      %s58 = ssub.s32 %s38, %s57
      %s59 = ssub.s32 %s39, %s53
      %s60 = sor.u32 %s58, %s59
      %p61 = scmp.eq.s32.totalorder %s60, 0
      %s63 = sadd.s32 %s62, 1
      %s64 = scalar_select %p61, %s62, %s63
      %p67 = pneg %p61
      %p68 = scmp.eq.s32.totalorder %s31, 7
      %p69 = por %p67, %p68
      %p70 = scmp.ne.s32.totalorder %s62, %s65
      %p71 = scmp.eq.s32.totalorder %s31, 0
      %p72 = por %p70, %p71
      %p73 = scmp.ne.s32.totalorder %s62, %s65
      %p74 = scmp.eq.s32.totalorder %s36, 7
      %p75 = por %p73, %p74
      %p76 = scmp.ne.s32.totalorder %s65, %s66
      %p77 = scmp.eq.s32.totalorder %s36, 0
      %p78 = por %p76, %p77
      %p79 = scmp.ne.s32.totalorder %s65, %s66
      %p80 = scmp.eq.s32.totalorder %s37, 7
      %p81 = por %p79, %p80
      %p83 = scmp.ne.s32.totalorder %s66, %s82
      %p84 = scmp.eq.s32.totalorder %s37, 0
      %p85 = por %p83, %p84
      %s86 = ssub.s32 %s38, %s57
      %p87 = scmp.eq.s32.totalorder %s86, 0
      %s89 = sadd.s32 %s88, 1
      %s90 = scalar_select %p87, %s88, %s89
      %p93 = pneg %p87
      %p94 = scmp.eq.s32.totalorder %s31, 7
      %p95 = por %p93, %p94
      %p96 = scmp.ne.s32.totalorder %s88, %s91
      %p97 = scmp.eq.s32.totalorder %s31, 0
      %p98 = por %p96, %p97
      %p99 = scmp.ne.s32.totalorder %s88, %s91
      %p100 = scmp.eq.s32.totalorder %s36, 7
      %p101 = por %p99, %p100
      %p102 = scmp.ne.s32.totalorder %s91, %s92
      %p103 = scmp.eq.s32.totalorder %s36, 0
      %p104 = por %p102, %p103
      %p105 = scmp.ne.s32.totalorder %s91, %s92
      %p106 = scmp.eq.s32.totalorder %s37, 7
      %p107 = por %p105, %p106
      %p109 = scmp.ne.s32.totalorder %s92, %s108
      %p110 = scmp.eq.s32.totalorder %s37, 0
      %p111 = por %p109, %p110
      %s112 = ssub.s32 %s40, %s49
      %p113 = scmp.eq.s32.totalorder %s112, 0
      %s115 = sadd.s32 %s114, 1
      %s116 = scalar_select %p113, %s114, %s115
      %p119 = pneg %p113
      %p120 = scmp.eq.s32.totalorder %s31, 7
      %p121 = por %p119, %p120
      %p122 = scmp.ne.s32.totalorder %s114, %s117
      %p123 = scmp.eq.s32.totalorder %s31, 0
      %p124 = por %p122, %p123
      %p125 = scmp.ne.s32.totalorder %s114, %s117
      %p126 = scmp.eq.s32.totalorder %s36, 7
      %p127 = por %p125, %p126
      %p128 = scmp.ne.s32.totalorder %s117, %s118
      %p129 = scmp.eq.s32.totalorder %s36, 0
      %p130 = por %p128, %p129
      %p131 = scmp.ne.s32.totalorder %s117, %s118
      %p132 = scmp.eq.s32.totalorder %s37, 7
      %p133 = por %p131, %p132
      %p135 = scmp.ne.s32.totalorder %s118, %s134
      %p136 = scmp.eq.s32.totalorder %s37, 0
      %p137 = por %p135, %p136
      %s138 = ssub.s32 %s40, %s49
      %p139 = scmp.eq.s32.totalorder %s138, 0
      %s141 = sadd.s32 %s140, 1
      %s142 = scalar_select %p139, %s140, %s141
      %p145 = pneg %p139
      %p146 = scmp.eq.s32.totalorder %s31, 7
      %p147 = por %p145, %p146
      %p148 = scmp.ne.s32.totalorder %s140, %s143
      %p149 = scmp.eq.s32.totalorder %s31, 0
      %p150 = por %p148, %p149
      %p151 = scmp.ne.s32.totalorder %s140, %s143
      %p152 = scmp.eq.s32.totalorder %s36, 7
      %p153 = por %p151, %p152
      %p154 = scmp.ne.s32.totalorder %s143, %s144
      %p155 = scmp.eq.s32.totalorder %s36, 0
      %p156 = por %p154, %p155
      %p157 = scmp.ne.s32.totalorder %s143, %s144
      %p158 = scmp.eq.s32.totalorder %s37, 7
      %p159 = por %p157, %p158
      %p161 = scmp.ne.s32.totalorder %s144, %s160
      %p162 = scmp.eq.s32.totalorder %s37, 0
      %p163 = por %p161, %p162
      %s164 = ssub.s32 %s40, %s49
      %p165 = scmp.eq.s32.totalorder %s164, 0
      %s167 = sadd.s32 %s166, 1
      %s168 = scalar_select %p165, %s166, %s167
      %p171 = pneg %p165
      %p172 = scmp.eq.s32.totalorder %s31, 7
      %p173 = por %p171, %p172
      %p174 = scmp.ne.s32.totalorder %s166, %s169
      %p175 = scmp.eq.s32.totalorder %s31, 0
      %p176 = por %p174, %p175
      %p177 = scmp.ne.s32.totalorder %s166, %s169
      %p178 = scmp.eq.s32.totalorder %s36, 7
      %p179 = por %p177, %p178
      %p180 = scmp.ne.s32.totalorder %s169, %s170
      %p181 = scmp.eq.s32.totalorder %s36, 0
      %p182 = por %p180, %p181
      %p183 = scmp.ne.s32.totalorder %s169, %s170
      %p184 = scmp.eq.s32.totalorder %s37, 7
      %p185 = por %p183, %p184
      %p187 = scmp.ne.s32.totalorder %s170, %s186
      %p188 = scmp.eq.s32.totalorder %s37, 0
      %p189 = por %p187, %p188
      %s190 = ssub.s32 %s40, %s49
      %p191 = scmp.eq.s32.totalorder %s190, 0
      %s193 = sadd.s32 %s192, 1
      %s194 = scalar_select %p191, %s192, %s193
      %p197 = pneg %p191
      %p198 = scmp.eq.s32.totalorder %s31, 7
      %p199 = por %p197, %p198
      %p200 = scmp.ne.s32.totalorder %s192, %s195
      %p201 = scmp.eq.s32.totalorder %s31, 0
      %p202 = por %p200, %p201
      %p203 = scmp.ne.s32.totalorder %s192, %s195
      %p204 = scmp.eq.s32.totalorder %s36, 7
      %p205 = por %p203, %p204
      %p206 = scmp.ne.s32.totalorder %s195, %s196
      %p207 = scmp.eq.s32.totalorder %s36, 0
      %p208 = por %p206, %p207
      %p209 = scmp.ne.s32.totalorder %s195, %s196
      %p210 = scmp.eq.s32.totalorder %s37, 7
      %p211 = por %p209, %p210
      %p213 = scmp.ne.s32.totalorder %s196, %s212
      %p214 = scmp.eq.s32.totalorder %s37, 0
      %p215 = por %p213, %p214
      %s216 = ssub.s32 %s40, %s49
      %p217 = scmp.eq.s32.totalorder %s216, 0
      %s219 = sadd.s32 %s218, 1
      %s220 = scalar_select %p217, %s218, %s219
      %p223 = pneg %p217
      %p224 = scmp.eq.s32.totalorder %s31, 7
      %p225 = por %p223, %p224
      %p226 = scmp.ne.s32.totalorder %s218, %s221
      %p227 = scmp.eq.s32.totalorder %s31, 0
      %p228 = por %p226, %p227
      %p229 = scmp.ne.s32.totalorder %s218, %s221
      %p230 = scmp.eq.s32.totalorder %s36, 7
      %p231 = por %p229, %p230
      %p232 = scmp.ne.s32.totalorder %s221, %s222
      %p233 = scmp.eq.s32.totalorder %s36, 0
      %p234 = por %p232, %p233
      %p235 = scmp.ne.s32.totalorder %s221, %s222
      %p236 = scmp.eq.s32.totalorder %s37, 7
      %p237 = por %p235, %p236
      %p239 = scmp.ne.s32.totalorder %s222, %s238
      %p240 = scmp.eq.s32.totalorder %s37, 0
      %p241 = por %p239, %p240
      %s242 = ssub.s32 %s40, %s49
      %p243 = scmp.eq.s32.totalorder %s242, 0
      %s245 = sadd.s32 %s244, 1
      %s246 = scalar_select %p243, %s244, %s245
      %p249 = pneg %p243
      %p250 = scmp.eq.s32.totalorder %s31, 7
      %p251 = por %p249, %p250
      %p252 = scmp.ne.s32.totalorder %s244, %s247
      %p253 = scmp.eq.s32.totalorder %s31, 0
      %p254 = por %p252, %p253
      %p255 = scmp.ne.s32.totalorder %s244, %s247
      %p256 = scmp.eq.s32.totalorder %s36, 7
      %p257 = por %p255, %p256
      %p258 = scmp.ne.s32.totalorder %s247, %s248
      %p259 = scmp.eq.s32.totalorder %s36, 0
      %p260 = por %p258, %p259
      %p261 = scmp.ne.s32.totalorder %s247, %s248
      %p262 = scmp.eq.s32.totalorder %s37, 7
      %p263 = por %p261, %p262
      %p265 = scmp.ne.s32.totalorder %s248, %s264
      %p266 = scmp.eq.s32.totalorder %s37, 0
      %p267 = por %p265, %p266
      %s268 = ssub.s32 %s40, %s49
      %p269 = scmp.eq.s32.totalorder %s268, 0
      %s271 = sadd.s32 %s270, 1
      %s272 = scalar_select %p269, %s270, %s271
      %p275 = pneg %p269
      %p276 = scmp.eq.s32.totalorder %s31, 7
      %p277 = por %p275, %p276
      %p278 = scmp.ne.s32.totalorder %s270, %s273
      %p279 = scmp.eq.s32.totalorder %s31, 0
      %p280 = por %p278, %p279
      %p281 = scmp.ne.s32.totalorder %s270, %s273
      %p282 = scmp.eq.s32.totalorder %s36, 7
      %p283 = por %p281, %p282
      %p284 = scmp.ne.s32.totalorder %s273, %s274
      %p285 = scmp.eq.s32.totalorder %s36, 0
      %p286 = por %p284, %p285
      %p287 = scmp.ne.s32.totalorder %s273, %s274
      %p288 = scmp.eq.s32.totalorder %s37, 7
      %p289 = por %p287, %p288
      %p291 = scmp.ne.s32.totalorder %s274, %s290
      %p292 = scmp.eq.s32.totalorder %s37, 0
      %p293 = por %p291, %p292
      %s295 = sadd.s32 %s294, 1
      %p298 = scmp.eq.s32.totalorder %s31, 7
      %p299 = scmp.ne.s32.totalorder %s294, %s296
      %p300 = scmp.eq.s32.totalorder %s31, 0
      %p301 = por %p299, %p300
      %p302 = scmp.ne.s32.totalorder %s294, %s296
      %p303 = scmp.eq.s32.totalorder %s36, 7
      %p304 = por %p302, %p303
      %p305 = scmp.ne.s32.totalorder %s296, %s297
      %p306 = scmp.eq.s32.totalorder %s36, 0
      %p307 = por %p305, %p306
      %p308 = scmp.ne.s32.totalorder %s296, %s297
      %p309 = scmp.eq.s32.totalorder %s37, 7
      %p310 = por %p308, %p309
      %p312 = scmp.ne.s32.totalorder %s297, %s311
      %p313 = scmp.eq.s32.totalorder %s37, 0
      %p314 = por %p312, %p313
      %s315 = ssub.s32 %s38, %s57
      %s316 = ssub.s32 %s39, %s53
      %s317 = sor.u32 %s315, %s316
      %p318 = scmp.eq.s32.totalorder %s317, 0
      %s320 = sadd.s32 %s319, 1
      %s321 = scalar_select %p318, %s319, %s320
      %p324 = pneg %p318
      %p325 = scmp.eq.s32.totalorder %s31, 7
      %p326 = por %p324, %p325
      %p327 = scmp.ne.s32.totalorder %s319, %s322
      %p328 = scmp.eq.s32.totalorder %s31, 0
      %p329 = por %p327, %p328
      %p330 = scmp.ne.s32.totalorder %s319, %s322
      %p331 = scmp.eq.s32.totalorder %s36, 7
      %p332 = por %p330, %p331
      %p333 = scmp.ne.s32.totalorder %s322, %s323
      %p334 = scmp.eq.s32.totalorder %s36, 0
      %p335 = por %p333, %p334
      %p336 = scmp.ne.s32.totalorder %s322, %s323
      %p337 = scmp.eq.s32.totalorder %s37, 7
      %p338 = por %p336, %p337
      %p340 = scmp.ne.s32.totalorder %s323, %s339
      %p341 = scmp.eq.s32.totalorder %s37, 0
      %p342 = por %p340, %p341
      %p343 = scmp.le.s32.totalorder 1, %s31
      %p344 = scmp.lt.s32.totalorder %s31, 9
      %p345 = pnand %p343, %p344
      %p346 = pneg %p345
      // Predicated region
      $region9: #{tpu_custom_call.1} parent=5 // pred_check
        _
      $region10: #{tpu_custom_call.1} parent=5 // pred_check_branch
        %348 = sbr.rel (%p345) target = $region12
      $region11: #{tpu_custom_call.1} parent=5 // pred_region
        %s349 = ssub.s32 %s31, 1
        // Predicated region
        $region13: #{tpu_custom_call.1} parent=11 // pred_check
          %p350 = pneg %p307
        $region14: #{tpu_custom_call.1} parent=11 // pred_check_branch
          %352 = sbr.rel (%p350) target = $region16
        $region15: #{tpu_custom_call.1} parent=11 // pred_region
          _
        $region16: #{tpu_custom_call.1} parent=11 // pred_fallthru
          _
      $region12: #{tpu_custom_call.1} parent=5 // pred_fallthru
        _
      %p353 = scmp.lt.s32.totalorder %s31, 8
      // Predicated region
      $region17: #{tpu_custom_call.1} parent=5 // pred_check
        %p354 = pneg %p353
      $region18: #{tpu_custom_call.1} parent=5 // pred_check_branch
        %356 = sbr.rel (%p354) target = $region20
      $region19: #{tpu_custom_call.1} parent=5 // pred_region
        // Predicated region
        $region21: #{tpu_custom_call.1} parent=19 // pred_check
          %p357 = pneg %p72
        $region22: #{tpu_custom_call.1} parent=19 // pred_check_branch
          %359 = sbr.rel (%p357) target = $region24
        $region23: #{tpu_custom_call.1} parent=19 // pred_region
          %s360 = sand.u32 %s62, 1
          %s361 = scalar_lea.sflag [#allocation4], %s360
          %s362 = sand.u32 %s62, 1
          %s363 = smul.addr %s362, 8
          %s364 = scalar_lea.vmem [#allocation3], %s363
          %s366 = ssub.s32 128, 128
          %367 = vsyncadd %s361, %s366
          %s368 = sadd.s32 %s39, %s38
          %s369 = smul.addr %s368, 128
          %s370 = scalar_lea.hbm %s0, %s369
          %s372 = sshll.u32 %s364, 4
          %s373 = int_to_ptr.vmem [resolvable:$true] %s372
          %375 = dma.hbm_to_vmem [thread:$0]  %s370, 128, %s373, %s361
        $region24: #{tpu_custom_call.1} parent=19 // pred_fallthru
          _
        // Predicated region
        $region25: #{tpu_custom_call.1} parent=19 // pred_check
          %p376 = pneg %p98
        $region26: #{tpu_custom_call.1} parent=19 // pred_check_branch
          %378 = sbr.rel (%p376) target = $region28
        $region27: #{tpu_custom_call.1} parent=19 // pred_region
          %s379 = sand.u32 %s31, 1
          %s380 = scalar_lea.sflag [#allocation7], %s379
          %s381 = sand.u32 %s88, 1
          %s382 = smul.addr %s381, 8
          %s383 = scalar_lea.vmem [#allocation6], %s382
          %s385 = ssub.s32 128, 128
          %386 = vsyncadd %s380, %s385
          %s387 = smul.addr %s38, 128
          %s388 = scalar_lea.hbm %s1, %s387
          %s390 = sshll.u32 %s383, 4
          %s391 = int_to_ptr.vmem [resolvable:$true] %s390
          %393 = dma.hbm_to_vmem [thread:$0]  %s388, 128, %s391, %s380
        $region28: #{tpu_custom_call.1} parent=19 // pred_fallthru
          _
        // Predicated region
        $region29: #{tpu_custom_call.1} parent=19 // pred_check
          %p394 = pneg %p124
        $region30: #{tpu_custom_call.1} parent=19 // pred_check_branch
          %396 = sbr.rel (%p394) target = $region32
        $region31: #{tpu_custom_call.1} parent=19 // pred_region
          %s397 = sand.u32 %s31, 1
          %s398 = scalar_lea.sflag [#allocation7], %s397
          %s399 = sand.u32 %s114, 1
          %s400 = smul.addr %s399, 8
          %s401 = scalar_lea.vmem [#allocation8], %s400
          %s403 = ssub.s32 128, 128
          %404 = vsyncadd %s398, %s403
          %s405 = smul.addr %s40, 128
          %s406 = scalar_lea.hbm %s2, %s405
          %s408 = sshll.u32 %s401, 4
          %s409 = int_to_ptr.vmem [resolvable:$true] %s408
          %411 = dma.hbm_to_vmem [thread:$0]  %s406, 128, %s409, %s398
        $region32: #{tpu_custom_call.1} parent=19 // pred_fallthru
          _
        // Predicated region
        $region33: #{tpu_custom_call.1} parent=19 // pred_check
          %p412 = pneg %p150
        $region34: #{tpu_custom_call.1} parent=19 // pred_check_branch
          %414 = sbr.rel (%p412) target = $region36
        $region35: #{tpu_custom_call.1} parent=19 // pred_region
          %p415 = scmp.lt.s32.totalorder %s40, 3
          %s416 = scalar_select %p415, %s40, 3
          %s417 = scalar_lea.vmem %s3, %s416
        $region36: #{tpu_custom_call.1} parent=19 // pred_fallthru
          _
        // Predicated region
        $region37: #{tpu_custom_call.1} parent=19 // pred_check
          %p418 = pneg %p176
        $region38: #{tpu_custom_call.1} parent=19 // pred_check_branch
          %420 = sbr.rel (%p418) target = $region40
        $region39: #{tpu_custom_call.1} parent=19 // pred_region
          %s421 = sand.u32 %s31, 1
          %s422 = scalar_lea.sflag [#allocation10], %s421
          %s423 = sand.u32 %s166, 1
          %s424 = smul.addr %s423, 8
          %s425 = scalar_lea.vmem [#allocation9], %s424
          %s427 = ssub.s32 128, 128
          %428 = vsyncadd %s422, %s427
          %s429 = smul.addr %s40, 128
          %s430 = scalar_lea.hbm %s4, %s429
          %s432 = sshll.u32 %s425, 4
          %s433 = int_to_ptr.vmem [resolvable:$true] %s432
          %435 = dma.hbm_to_vmem [thread:$0]  %s430, 128, %s433, %s422
        $region40: #{tpu_custom_call.1} parent=19 // pred_fallthru
          _
        // Predicated region
        $region41: #{tpu_custom_call.1} parent=19 // pred_check
          %p436 = pneg %p202
        $region42: #{tpu_custom_call.1} parent=19 // pred_check_branch
          %438 = sbr.rel (%p436) target = $region44
        $region43: #{tpu_custom_call.1} parent=19 // pred_region
          %p439 = scmp.lt.s32.totalorder %s40, 3
          %s440 = scalar_select %p439, %s40, 3
          %s441 = scalar_lea.vmem %s5, %s440
        $region44: #{tpu_custom_call.1} parent=19 // pred_fallthru
          _
        // Predicated region
        $region45: #{tpu_custom_call.1} parent=19 // pred_check
          %p442 = pneg %p228
        $region46: #{tpu_custom_call.1} parent=19 // pred_check_branch
          %444 = sbr.rel (%p442) target = $region48
        $region47: #{tpu_custom_call.1} parent=19 // pred_region
          %s445 = sand.u32 %s31, 1
          %s446 = scalar_lea.sflag [#allocation10], %s445
          %s447 = sand.u32 %s218, 1
          %s448 = smul.addr %s447, 8
          %s449 = scalar_lea.vmem [#allocation11], %s448
          %s451 = ssub.s32 128, 128
          %452 = vsyncadd %s446, %s451
          %s453 = smul.addr %s40, 128
          %s454 = scalar_lea.hbm %s6, %s453
          %s456 = sshll.u32 %s449, 4
          %s457 = int_to_ptr.vmem [resolvable:$true] %s456
          %459 = dma.hbm_to_vmem [thread:$0]  %s454, 128, %s457, %s446
        $region48: #{tpu_custom_call.1} parent=19 // pred_fallthru
          _
        // Predicated region
        $region49: #{tpu_custom_call.1} parent=19 // pred_check
          %p460 = pneg %p254
        $region50: #{tpu_custom_call.1} parent=19 // pred_check_branch
          %462 = sbr.rel (%p460) target = $region52
        $region51: #{tpu_custom_call.1} parent=19 // pred_region
          %p463 = scmp.lt.s32.totalorder %s40, 3
          %s464 = scalar_select %p463, %s40, 3
          %s465 = scalar_lea.vmem %s7, %s464
        $region52: #{tpu_custom_call.1} parent=19 // pred_fallthru
          _
        // Predicated region
        $region53: #{tpu_custom_call.1} parent=19 // pred_check
          %p466 = pneg %p280
        $region54: #{tpu_custom_call.1} parent=19 // pred_check_branch
          %468 = sbr.rel (%p466) target = $region56
        $region55: #{tpu_custom_call.1} parent=19 // pred_region
          %s469 = sand.u32 %s270, 1
          %s470 = scalar_lea.sflag [#allocation13], %s469
          %s471 = sand.u32 %s270, 1
          %s472 = smul.addr %s471, 8
          %s473 = scalar_lea.vmem [#allocation12], %s472
          %s475 = ssub.s32 128, 128
          %476 = vsyncadd %s470, %s475
          %s477 = smul.addr %s40, 128
          %s478 = scalar_lea.hbm %s8, %s477
          %s480 = sshll.u32 %s473, 4
          %s481 = int_to_ptr.vmem [resolvable:$true] %s480
          %483 = dma.hbm_to_vmem [thread:$0]  %s478, 128, %s481, %s470
        $region56: #{tpu_custom_call.1} parent=19 // pred_fallthru
          _
      $region20: #{tpu_custom_call.1} parent=5 // pred_fallthru
        _
      %p484 = scmp.le.s32.totalorder 1, %s31
      %p485 = scmp.lt.s32.totalorder %s31, 9
      %p486 = pnand %p484, %p485
      %p487 = pneg %p486
      // Predicated region
      $region57: #{tpu_custom_call.1} parent=5 // pred_check
        _
      $region58: #{tpu_custom_call.1} parent=5 // pred_check_branch
        %489 = sbr.rel (%p486) target = $region60
      $region59: #{tpu_custom_call.1} parent=5 // pred_region
        %s490 = ssub.s32 %s31, 1
        %s491 = sand.u32 %s65, 1
        %s492 = scalar_lea.sflag [#allocation4], %s491
        %s493 = sand.u32 %s65, 1
        %s494 = smul.addr %s493, 8
        %s495 = scalar_lea.vmem [#allocation3], %s494
        // Predicated region
        $region61: #{tpu_custom_call.1} parent=59 // pred_check
          %p496 = pneg %p78
        $region62: #{tpu_custom_call.1} parent=59 // pred_check_branch
          %498 = sbr.rel (%p496) target = $region64
        $region63: #{tpu_custom_call.1} parent=59 // pred_region
          %499 = dma.done %s492, 128
        $region64: #{tpu_custom_call.1} parent=59 // pred_fallthru
          _
        %s500 = sand.u32 %s36, 1
        %s501 = scalar_lea.sflag [#allocation7], %s500
        %s502 = sand.u32 %s91, 1
        %s503 = smul.addr %s502, 8
        %s504 = scalar_lea.vmem [#allocation6], %s503
        // Predicated region
        $region65: #{tpu_custom_call.1} parent=59 // pred_check
          %p505 = pneg %p104
        $region66: #{tpu_custom_call.1} parent=59 // pred_check_branch
          %507 = sbr.rel (%p505) target = $region68
        $region67: #{tpu_custom_call.1} parent=59 // pred_region
          %508 = dma.done %s501, 128
        $region68: #{tpu_custom_call.1} parent=59 // pred_fallthru
          _
        %s509 = sand.u32 %s36, 1
        %s510 = scalar_lea.sflag [#allocation7], %s509
        %s511 = sand.u32 %s117, 1
        %s512 = smul.addr %s511, 8
        %s513 = scalar_lea.vmem [#allocation8], %s512
        // Predicated region
        $region69: #{tpu_custom_call.1} parent=59 // pred_check
          %p514 = pneg %p130
        $region70: #{tpu_custom_call.1} parent=59 // pred_check_branch
          %516 = sbr.rel (%p514) target = $region72
        $region71: #{tpu_custom_call.1} parent=59 // pred_region
          %517 = dma.done %s510, 128
        $region72: #{tpu_custom_call.1} parent=59 // pred_fallthru
          _
        %s518 = sand.u32 %s36, 1
        %s519 = scalar_lea.sflag [#allocation10], %s518
        %s520 = sand.u32 %s169, 1
        %s521 = smul.addr %s520, 8
        %s522 = scalar_lea.vmem [#allocation9], %s521
        // Predicated region
        $region73: #{tpu_custom_call.1} parent=59 // pred_check
          %p523 = pneg %p182
        $region74: #{tpu_custom_call.1} parent=59 // pred_check_branch
          %525 = sbr.rel (%p523) target = $region76
        $region75: #{tpu_custom_call.1} parent=59 // pred_region
          %526 = dma.done %s519, 128
        $region76: #{tpu_custom_call.1} parent=59 // pred_fallthru
          _
        %s527 = sand.u32 %s36, 1
        %s528 = scalar_lea.sflag [#allocation10], %s527
        %s529 = sand.u32 %s221, 1
        %s530 = smul.addr %s529, 8
        %s531 = scalar_lea.vmem [#allocation11], %s530
        // Predicated region
        $region77: #{tpu_custom_call.1} parent=59 // pred_check
          %p532 = pneg %p234
        $region78: #{tpu_custom_call.1} parent=59 // pred_check_branch
          %534 = sbr.rel (%p532) target = $region80
        $region79: #{tpu_custom_call.1} parent=59 // pred_region
          %535 = dma.done %s528, 128
        $region80: #{tpu_custom_call.1} parent=59 // pred_fallthru
          _
        %s536 = sand.u32 %s273, 1
        %s537 = scalar_lea.sflag [#allocation13], %s536
        %s538 = sand.u32 %s273, 1
        %s539 = smul.addr %s538, 8
        %s540 = scalar_lea.vmem [#allocation12], %s539
        // Predicated region
        $region81: #{tpu_custom_call.1} parent=59 // pred_check
          %p541 = pneg %p286
        $region82: #{tpu_custom_call.1} parent=59 // pred_check_branch
          %543 = sbr.rel (%p541) target = $region84
        $region83: #{tpu_custom_call.1} parent=59 // pred_region
          %544 = dma.done %s537, 128
        $region84: #{tpu_custom_call.1} parent=59 // pred_fallthru
          _
        %s545 = sand.u32 %s65, 1
        %s546 = scalar_lea.sflag [#allocation4], %s545
        %s547 = sand.u32 %s65, 1
        %s548 = smul.addr %s547, 8
        %s549 = scalar_lea.vmem [#allocation3], %s548
        %p550 = pneg %p78
        %p551 = pneg %p75
        %s552 = sand.u32 %s36, 1
        %s553 = scalar_lea.sflag [#allocation7], %s552
        %s554 = sand.u32 %s91, 1
        %s555 = smul.addr %s554, 8
        %s556 = scalar_lea.vmem [#allocation6], %s555
        %p557 = pneg %p104
        %p558 = pneg %p101
        %s559 = sand.u32 %s36, 1
        %s560 = scalar_lea.sflag [#allocation7], %s559
        %s561 = sand.u32 %s117, 1
        %s562 = smul.addr %s561, 8
        %s563 = scalar_lea.vmem [#allocation8], %s562
        %p564 = pneg %p130
        %p565 = pneg %p127
        %p566 = scmp.lt.s32.totalorder %s43, 3
        %s567 = scalar_select %p566, %s43, 3
        %s568 = scalar_lea.vmem %s3, %s567
        %p569 = pneg %p156
        %p570 = pneg %p153
        %s571 = sand.u32 %s36, 1
        %s572 = scalar_lea.sflag [#allocation10], %s571
        %s573 = sand.u32 %s169, 1
        %s574 = smul.addr %s573, 8
        %s575 = scalar_lea.vmem [#allocation9], %s574
        %p576 = pneg %p182
        %p577 = pneg %p179
        %p578 = scmp.lt.s32.totalorder %s43, 3
        %s579 = scalar_select %p578, %s43, 3
        %s580 = scalar_lea.vmem %s5, %s579
        %p581 = pneg %p208
        %p582 = pneg %p205
        %s583 = sand.u32 %s36, 1
        %s584 = scalar_lea.sflag [#allocation10], %s583
        %s585 = sand.u32 %s221, 1
        %s586 = smul.addr %s585, 8
        %s587 = scalar_lea.vmem [#allocation11], %s586
        %p588 = pneg %p234
        %p589 = pneg %p231
        %p590 = scmp.lt.s32.totalorder %s43, 3
        %s591 = scalar_select %p590, %s43, 3
        %s592 = scalar_lea.vmem %s7, %s591
        %p593 = pneg %p260
        %p594 = pneg %p257
        %s595 = sand.u32 %s273, 1
        %s596 = scalar_lea.sflag [#allocation13], %s595
        %s597 = sand.u32 %s273, 1
        %s598 = smul.addr %s597, 8
        %s599 = scalar_lea.vmem [#allocation12], %s598
        %p600 = pneg %p286
        %p601 = pneg %p283
        %p602 = pneg %p307
        %p603 = pneg %p304
        %p604 = pneg %p335
        %p605 = pneg %p332
        %s606 = sand.u32 %s322, 1
        %s607 = scalar_lea.sflag [#allocation5], %s606
        %s608 = sand.u32 %s322, 1
        %s609 = smul.addr %s608, 8
        %s610 = scalar_lea.vmem [#allocation14], %s609
        %p611 = scmp.lt.s32.totalorder %s43, 3
        %s612 = scalar_select %p611, %s43, 3
        %s613 = scalar_lea.vmem %s3, %s612
        %p614 = scmp.lt.s32.totalorder %s43, 3
        %s615 = scalar_select %p614, %s43, 3
        %s616 = scalar_lea.vmem %s5, %s615
        %p617 = scmp.lt.s32.totalorder %s43, 3
        %s618 = scalar_select %p617, %s43, 3
        %s619 = scalar_lea.vmem %s7, %s618
        %v620 = vld [vmem:[%s495] sm:$0xff]
        %v621 = vld [vmem:[%s504] sm:$0xff]
        %p622 = scmp.eq.s32.totalorder %s43, 0
        // Predicated region
        $region85: #{tpu_custom_call.1} parent=59 // pred_check
          %p623 = pneg %p622
        $region86: #{tpu_custom_call.1} parent=59 // pred_check_branch
          %625 = sbr.rel (%p623) target = $region88
        $region87: #{tpu_custom_call.1} parent=59 // pred_region
          %v626 = vld [vmem:[%s9] sm:$0x1]
          %v628 = vlaneseq
          %v629 = vshrl.u32 %v628, 7
          %v630 = vsub.s32 0, %v629
          %v631 = vrot.slane %v626, %v630
          %v633 = vadd.f32 %v620, %v631
          %vm634 = vcmask 261120
          %635 = vst.msk [vmem:[#allocation2] sm:$0xff] %vm634, %v633
        $region88: #{tpu_custom_call.1} parent=59 // pred_fallthru
          _
        %v636 = vld [vmem:[%s513] sm:$0xff]
        %v637 = vld [vmem:[%s613] sm:$0x1]
        %v639 = vlaneseq
        %v640 = vshrl.u32 %v639, 7
        %v641 = vsub.s32 0, %v640
        %v642 = vrot.slane %v637, %v641
        %vm644 = vcmask 261120
        %v646 = vsel %vm644, %v620, 0
        %v649 = vsel %vm644, %v636, 0
        %651 = vmatprep.subr.mxu0 0.0
        %652 = vmatpush1.xpose.msra.mxu0 %v649
        %653 = vmatprep.subr.mxu0 0.0
        %654 = vmatpush1.xpose.msra.mxu0 0.0
        %655 = vmatprep.subr.mxu0 0.0
        %656 = vmatpush1.xpose.msra.mxu0 0.0
        %657 = vmatprep.subr.mxu0 0.0
        %658 = vmatpush1.xpose.msra.mxu0 0.0
        %659 = vmatprep.subr.mxu0 0.0
        %660 = vmatpush1.xpose.msra.mxu0 0.0
        %661 = vmatprep.subr.mxu0 0.0
        %662 = vmatpush1.xpose.msra.mxu0 0.0
        %663 = vmatprep.subr.mxu0 0.0
        %664 = vmatpush1.xpose.msra.mxu0 0.0
        %665 = vmatprep.subr.mxu0 0.0
        %666 = vmatpush1.xpose.msra.mxu0 0.0
        %667 = vmatprep.subr.mxu0 0.0
        %668 = vmatpush1.xpose.msra.mxu0 0.0
        %669 = vmatprep.subr.mxu0 0.0
        %670 = vmatpush1.xpose.msra.mxu0 0.0
        %671 = vmatprep.subr.mxu0 0.0
        %672 = vmatpush1.xpose.msra.mxu0 0.0
        %673 = vmatprep.subr.mxu0 0.0
        %674 = vmatpush1.xpose.msra.mxu0 0.0
        %675 = vmatprep.subr.mxu0 0.0
        %676 = vmatpush1.xpose.msra.mxu0 0.0
        %677 = vmatprep.subr.mxu0 0.0
        %678 = vmatpush1.xpose.msra.mxu0 0.0
        %679 = vmatprep.subr.mxu0 0.0
        %680 = vmatpush1.xpose.msra.mxu0 0.0
        %681 = vmatprep.subr.mxu0 0.0
        %682 = vmatpush1.xpose.msra.mxu0 0.0
        %683 = vmatprep.subr.mxu0 0.0
        %684 = vmatpush1.xpose.msra.mxu0 0.0
        %685 = vmatprep.subr.mxu0 0.0
        %686 = vmatpush1.xpose.msra.mxu0 0.0
        %687 = vmatprep.subr.mxu0 0.0
        %688 = vmatpush1.xpose.msra.mxu0 0.0
        %689 = vmatprep.subr.mxu0 0.0
        %690 = vmatpush1.xpose.msra.mxu0 0.0
        %691 = vmatprep.subr.mxu0 0.0
        %692 = vmatpush1.xpose.msra.mxu0 0.0
        %693 = vmatprep.subr.mxu0 0.0
        %694 = vmatpush1.xpose.msra.mxu0 0.0
        %695 = vmatprep.subr.mxu0 0.0
        %696 = vmatpush1.xpose.msra.mxu0 0.0
        %697 = vmatprep.subr.mxu0 0.0
        %698 = vmatpush1.xpose.msra.mxu0 0.0
        %699 = vmatprep.subr.mxu0 0.0
        %700 = vmatpush1.xpose.msra.mxu0 0.0
        %701 = vmatprep.subr.mxu0 0.0
        %702 = vmatpush1.xpose.msra.mxu0 0.0
        %703 = vmatprep.subr.mxu0 0.0
        %704 = vmatpush1.xpose.msra.mxu0 0.0
        %705 = vmatprep.subr.mxu0 0.0
        %706 = vmatpush1.xpose.msra.mxu0 0.0
        %707 = vmatprep.subr.mxu0 0.0
        %708 = vmatpush1.xpose.msra.mxu0 0.0
        %709 = vmatprep.subr.mxu0 0.0
        %710 = vmatpush1.xpose.msra.mxu0 0.0
        %711 = vmatprep.subr.mxu0 0.0
        %712 = vmatpush1.xpose.msra.mxu0 0.0
        %713 = vmatprep.subr.mxu0 0.0
        %714 = vmatpush1.xpose.msra.mxu0 0.0
        %715 = vmatprep.mubr.f32.mxu0 0.0
        %716 = vmatmul.mubr.f32.gmra.mrb[0].mxu0 %v646
        %v717 = vpop.f32.mrb[0].mxu0
        %v718 = vadd.f32 %v642, %v717
        %v719 = vpop.f32.mrb[0].mxu0
        %720 = vdwg.mxu0
        %v721 = vld [vmem:[%s522] sm:$0xff]
        %v722 = vld [vmem:[%s616] sm:$0x1]
        %v724 = vlaneseq
        %v725 = vshrl.u32 %v724, 7
        %v726 = vsub.s32 0, %v725
        %v727 = vrot.slane %v722, %v726
        %v730 = vsel %vm644, %v621, 0
        %v733 = vsel %vm644, %v721, 0
        %735 = vmatprep.subr.mxu0 0.0
        %736 = vmatpush1.xpose.msra.mxu0 %v733
        %737 = vmatprep.subr.mxu0 0.0
        %738 = vmatpush1.xpose.msra.mxu0 0.0
        %739 = vmatprep.subr.mxu0 0.0
        %740 = vmatpush1.xpose.msra.mxu0 0.0
        %741 = vmatprep.subr.mxu0 0.0
        %742 = vmatpush1.xpose.msra.mxu0 0.0
        %743 = vmatprep.subr.mxu0 0.0
        %744 = vmatpush1.xpose.msra.mxu0 0.0
        %745 = vmatprep.subr.mxu0 0.0
        %746 = vmatpush1.xpose.msra.mxu0 0.0
        %747 = vmatprep.subr.mxu0 0.0
        %748 = vmatpush1.xpose.msra.mxu0 0.0
        %749 = vmatprep.subr.mxu0 0.0
        %750 = vmatpush1.xpose.msra.mxu0 0.0
        %751 = vmatprep.subr.mxu0 0.0
        %752 = vmatpush1.xpose.msra.mxu0 0.0
        %753 = vmatprep.subr.mxu0 0.0
        %754 = vmatpush1.xpose.msra.mxu0 0.0
        %755 = vmatprep.subr.mxu0 0.0
        %756 = vmatpush1.xpose.msra.mxu0 0.0
        %757 = vmatprep.subr.mxu0 0.0
        %758 = vmatpush1.xpose.msra.mxu0 0.0
        %759 = vmatprep.subr.mxu0 0.0
        %760 = vmatpush1.xpose.msra.mxu0 0.0
        %761 = vmatprep.subr.mxu0 0.0
        %762 = vmatpush1.xpose.msra.mxu0 0.0
        %763 = vmatprep.subr.mxu0 0.0
        %764 = vmatpush1.xpose.msra.mxu0 0.0
        %765 = vmatprep.subr.mxu0 0.0
        %766 = vmatpush1.xpose.msra.mxu0 0.0
        %767 = vmatprep.subr.mxu0 0.0
        %768 = vmatpush1.xpose.msra.mxu0 0.0
        %769 = vmatprep.subr.mxu0 0.0
        %770 = vmatpush1.xpose.msra.mxu0 0.0
        %771 = vmatprep.subr.mxu0 0.0
        %772 = vmatpush1.xpose.msra.mxu0 0.0
        %773 = vmatprep.subr.mxu0 0.0
        %774 = vmatpush1.xpose.msra.mxu0 0.0
        %775 = vmatprep.subr.mxu0 0.0
        %776 = vmatpush1.xpose.msra.mxu0 0.0
        %777 = vmatprep.subr.mxu0 0.0
        %778 = vmatpush1.xpose.msra.mxu0 0.0
        %779 = vmatprep.subr.mxu0 0.0
        %780 = vmatpush1.xpose.msra.mxu0 0.0
        %781 = vmatprep.subr.mxu0 0.0
        %782 = vmatpush1.xpose.msra.mxu0 0.0
        %783 = vmatprep.subr.mxu0 0.0
        %784 = vmatpush1.xpose.msra.mxu0 0.0
        %785 = vmatprep.subr.mxu0 0.0
        %786 = vmatpush1.xpose.msra.mxu0 0.0
        %787 = vmatprep.subr.mxu0 0.0
        %788 = vmatpush1.xpose.msra.mxu0 0.0
        %789 = vmatprep.subr.mxu0 0.0
        %790 = vmatpush1.xpose.msra.mxu0 0.0
        %791 = vmatprep.subr.mxu0 0.0
        %792 = vmatpush1.xpose.msra.mxu0 0.0
        %793 = vmatprep.subr.mxu0 0.0
        %794 = vmatpush1.xpose.msra.mxu0 0.0
        %795 = vmatprep.subr.mxu0 0.0
        %796 = vmatpush1.xpose.msra.mxu0 0.0
        %797 = vmatprep.subr.mxu0 0.0
        %798 = vmatpush1.xpose.msra.mxu0 0.0
        %799 = vmatprep.mubr.f32.mxu0 0.0
        %800 = vmatmul.mubr.f32.gmra.mrb[0].mxu0 %v730
        %v801 = vpop.f32.mrb[0].mxu0
        %v802 = vadd.f32 %v727, %v801
        %v803 = vpop.f32.mrb[0].mxu0
        %804 = vdwg.mxu0
        %v805 = vld [vmem:[%s531] sm:$0xff]
        %v806 = vld [vmem:[%s619] sm:$0x1]
        %v808 = vlaneseq
        %v809 = vshrl.u32 %v808, 7
        %v810 = vsub.s32 0, %v809
        %v811 = vrot.slane %v806, %v810
        %v814 = vsel %vm644, %v805, 0
        %816 = vmatprep.subr.mxu0 0.0
        %817 = vmatpush1.xpose.msra.mxu0 %v814
        %818 = vmatprep.subr.mxu0 0.0
        %819 = vmatpush1.xpose.msra.mxu0 0.0
        %820 = vmatprep.subr.mxu0 0.0
        %821 = vmatpush1.xpose.msra.mxu0 0.0
        %822 = vmatprep.subr.mxu0 0.0
        %823 = vmatpush1.xpose.msra.mxu0 0.0
        %824 = vmatprep.subr.mxu0 0.0
        %825 = vmatpush1.xpose.msra.mxu0 0.0
        %826 = vmatprep.subr.mxu0 0.0
        %827 = vmatpush1.xpose.msra.mxu0 0.0
        %828 = vmatprep.subr.mxu0 0.0
        %829 = vmatpush1.xpose.msra.mxu0 0.0
        %830 = vmatprep.subr.mxu0 0.0
        %831 = vmatpush1.xpose.msra.mxu0 0.0
        %832 = vmatprep.subr.mxu0 0.0
        %833 = vmatpush1.xpose.msra.mxu0 0.0
        %834 = vmatprep.subr.mxu0 0.0
        %835 = vmatpush1.xpose.msra.mxu0 0.0
        %836 = vmatprep.subr.mxu0 0.0
        %837 = vmatpush1.xpose.msra.mxu0 0.0
        %838 = vmatprep.subr.mxu0 0.0
        %839 = vmatpush1.xpose.msra.mxu0 0.0
        %840 = vmatprep.subr.mxu0 0.0
        %841 = vmatpush1.xpose.msra.mxu0 0.0
        %842 = vmatprep.subr.mxu0 0.0
        %843 = vmatpush1.xpose.msra.mxu0 0.0
        %844 = vmatprep.subr.mxu0 0.0
        %845 = vmatpush1.xpose.msra.mxu0 0.0
        %846 = vmatprep.subr.mxu0 0.0
        %847 = vmatpush1.xpose.msra.mxu0 0.0
        %848 = vmatprep.subr.mxu0 0.0
        %849 = vmatpush1.xpose.msra.mxu0 0.0
        %850 = vmatprep.subr.mxu0 0.0
        %851 = vmatpush1.xpose.msra.mxu0 0.0
        %852 = vmatprep.subr.mxu0 0.0
        %853 = vmatpush1.xpose.msra.mxu0 0.0
        %854 = vmatprep.subr.mxu0 0.0
        %855 = vmatpush1.xpose.msra.mxu0 0.0
        %856 = vmatprep.subr.mxu0 0.0
        %857 = vmatpush1.xpose.msra.mxu0 0.0
        %858 = vmatprep.subr.mxu0 0.0
        %859 = vmatpush1.xpose.msra.mxu0 0.0
        %860 = vmatprep.subr.mxu0 0.0
        %861 = vmatpush1.xpose.msra.mxu0 0.0
        %862 = vmatprep.subr.mxu0 0.0
        %863 = vmatpush1.xpose.msra.mxu0 0.0
        %864 = vmatprep.subr.mxu0 0.0
        %865 = vmatpush1.xpose.msra.mxu0 0.0
        %866 = vmatprep.subr.mxu0 0.0
        %867 = vmatpush1.xpose.msra.mxu0 0.0
        %868 = vmatprep.subr.mxu0 0.0
        %869 = vmatpush1.xpose.msra.mxu0 0.0
        %870 = vmatprep.subr.mxu0 0.0
        %871 = vmatpush1.xpose.msra.mxu0 0.0
        %872 = vmatprep.subr.mxu0 0.0
        %873 = vmatpush1.xpose.msra.mxu0 0.0
        %874 = vmatprep.subr.mxu0 0.0
        %875 = vmatpush1.xpose.msra.mxu0 0.0
        %876 = vmatprep.subr.mxu0 0.0
        %877 = vmatpush1.xpose.msra.mxu0 0.0
        %878 = vmatprep.subr.mxu0 0.0
        %879 = vmatpush1.xpose.msra.mxu0 0.0
        %880 = vmatprep.mubr.f32.mxu0 0.0
        %881 = vmatmul.mubr.f32.gmra.mrb[0].mxu0 %v730
        %v882 = vpop.f32.mrb[0].mxu0
        %v883 = vadd.f32 %v811, %v882
        %v884 = vpop.f32.mrb[0].mxu0
        %885 = vdwg.mxu0
        %v886 = vmul.f32 %v718, 0.17677669
        %vm887 = vcmask 64512
        %v889 = vsel %vm887, %v886, 0
        %v892 = vsel %vm887, %v802, 0
        %894 = vmatprep.subr.mxu0 0.0
        %895 = vmatpush1.xpose.msra.mxu0 %v892
        %896 = vmatprep.subr.mxu0 0.0
        %897 = vmatpush1.xpose.msra.mxu0 0.0
        %898 = vmatprep.subr.mxu0 0.0
        %899 = vmatpush1.xpose.msra.mxu0 0.0
        %900 = vmatprep.subr.mxu0 0.0
        %901 = vmatpush1.xpose.msra.mxu0 0.0
        %902 = vmatprep.subr.mxu0 0.0
        %903 = vmatpush1.xpose.msra.mxu0 0.0
        %904 = vmatprep.subr.mxu0 0.0
        %905 = vmatpush1.xpose.msra.mxu0 0.0
        %906 = vmatprep.subr.mxu0 0.0
        %907 = vmatpush1.xpose.msra.mxu0 0.0
        %908 = vmatprep.subr.mxu0 0.0
        %909 = vmatpush1.xpose.msra.mxu0 0.0
        %910 = vmatprep.subr.mxu0 0.0
        %911 = vmatpush1.xpose.msra.mxu0 0.0
        %912 = vmatprep.subr.mxu0 0.0
        %913 = vmatpush1.xpose.msra.mxu0 0.0
        %914 = vmatprep.subr.mxu0 0.0
        %915 = vmatpush1.xpose.msra.mxu0 0.0
        %916 = vmatprep.subr.mxu0 0.0
        %917 = vmatpush1.xpose.msra.mxu0 0.0
        %918 = vmatprep.subr.mxu0 0.0
        %919 = vmatpush1.xpose.msra.mxu0 0.0
        %920 = vmatprep.subr.mxu0 0.0
        %921 = vmatpush1.xpose.msra.mxu0 0.0
        %922 = vmatprep.subr.mxu0 0.0
        %923 = vmatpush1.xpose.msra.mxu0 0.0
        %924 = vmatprep.subr.mxu0 0.0
        %925 = vmatpush1.xpose.msra.mxu0 0.0
        %926 = vmatprep.subr.mxu0 0.0
        %927 = vmatpush1.xpose.msra.mxu0 0.0
        %928 = vmatprep.subr.mxu0 0.0
        %929 = vmatpush1.xpose.msra.mxu0 0.0
        %930 = vmatprep.subr.mxu0 0.0
        %931 = vmatpush1.xpose.msra.mxu0 0.0
        %932 = vmatprep.subr.mxu0 0.0
        %933 = vmatpush1.xpose.msra.mxu0 0.0
        %934 = vmatprep.subr.mxu0 0.0
        %935 = vmatpush1.xpose.msra.mxu0 0.0
        %936 = vmatprep.subr.mxu0 0.0
        %937 = vmatpush1.xpose.msra.mxu0 0.0
        %938 = vmatprep.subr.mxu0 0.0
        %939 = vmatpush1.xpose.msra.mxu0 0.0
        %940 = vmatprep.subr.mxu0 0.0
        %941 = vmatpush1.xpose.msra.mxu0 0.0
        %942 = vmatprep.subr.mxu0 0.0
        %943 = vmatpush1.xpose.msra.mxu0 0.0
        %944 = vmatprep.subr.mxu0 0.0
        %945 = vmatpush1.xpose.msra.mxu0 0.0
        %946 = vmatprep.subr.mxu0 0.0
        %947 = vmatpush1.xpose.msra.mxu0 0.0
        %948 = vmatprep.subr.mxu0 0.0
        %949 = vmatpush1.xpose.msra.mxu0 0.0
        %950 = vmatprep.subr.mxu0 0.0
        %951 = vmatpush1.xpose.msra.mxu0 0.0
        %952 = vmatprep.subr.mxu0 0.0
        %953 = vmatpush1.xpose.msra.mxu0 0.0
        %954 = vmatprep.subr.mxu0 0.0
        %955 = vmatpush1.xpose.msra.mxu0 0.0
        %956 = vmatprep.subr.mxu0 0.0
        %957 = vmatpush1.xpose.msra.mxu0 0.0
        %958 = vmatprep.mubr.f32.mxu0 0.0
        %959 = vmatmul.mubr.f32.gmra.mrb[0].mxu0 %v889
        %v960 = vpop.f32.mrb[0].mxu0
        %v961 = vadd.f32 0.0, %v960
        %v962 = vpop.f32.mrb[0].mxu0
        %963 = vdwg.mxu0
        %v964 = vsel %vm887, %v961, -inf
        %965 = vmax.xlane.f32.xlu0 %v964
        %v966 = vpop.xlane.xlu0 %965
        %v967 = vsub.f32 %v961, %v966
        %v968 = vmul.f32 %v967, 1.442695
        %v969 = vpow.pop %v968
        %v970 = vsel %vm887, %v969, 0.0
        %971 = vadd.xlane.f32.xlu0 %v970
        %v972 = vpop.xlane.xlu0 %971
        %v973 = vrcp.pop %v972
        %v974 = vmul.f32 %v969, %v973
        %v976 = vsel %vm887, %v974, 0
        %978 = vmatprep.subr.mxu0 0.0
        %979 = vmatpush1.msra.mxu0 %v883
        %980 = vmatprep.subr.mxu0 0.0
        %981 = vmatpush1.msra.mxu0 0.0
        %982 = vmatprep.subr.mxu0 0.0
        %983 = vmatpush1.msra.mxu0 0.0
        %984 = vmatprep.subr.mxu0 0.0
        %985 = vmatpush1.msra.mxu0 0.0
        %986 = vmatprep.subr.mxu0 0.0
        %987 = vmatpush1.msra.mxu0 0.0
        %988 = vmatprep.subr.mxu0 0.0
        %989 = vmatpush1.msra.mxu0 0.0
        %990 = vmatprep.subr.mxu0 0.0
        %991 = vmatpush1.msra.mxu0 0.0
        %992 = vmatprep.subr.mxu0 0.0
        %993 = vmatpush1.msra.mxu0 0.0
        %994 = vmatprep.subr.mxu0 0.0
        %995 = vmatpush1.msra.mxu0 0.0
        %996 = vmatprep.subr.mxu0 0.0
        %997 = vmatpush1.msra.mxu0 0.0
        %998 = vmatprep.subr.mxu0 0.0
        %999 = vmatpush1.msra.mxu0 0.0
        %1000 = vmatprep.subr.mxu0 0.0
        %1001 = vmatpush1.msra.mxu0 0.0
        %1002 = vmatprep.subr.mxu0 0.0
        %1003 = vmatpush1.msra.mxu0 0.0
        %1004 = vmatprep.subr.mxu0 0.0
        %1005 = vmatpush1.msra.mxu0 0.0
        %1006 = vmatprep.subr.mxu0 0.0
        %1007 = vmatpush1.msra.mxu0 0.0
        %1008 = vmatprep.subr.mxu0 0.0
        %1009 = vmatpush1.msra.mxu0 0.0
        %1010 = vmatprep.subr.mxu0 0.0
        %1011 = vmatpush1.msra.mxu0 0.0
        %1012 = vmatprep.subr.mxu0 0.0
        %1013 = vmatpush1.msra.mxu0 0.0
        %1014 = vmatprep.subr.mxu0 0.0
        %1015 = vmatpush1.msra.mxu0 0.0
        %1016 = vmatprep.subr.mxu0 0.0
        %1017 = vmatpush1.msra.mxu0 0.0
        %1018 = vmatprep.subr.mxu0 0.0
        %1019 = vmatpush1.msra.mxu0 0.0
        %1020 = vmatprep.subr.mxu0 0.0
        %1021 = vmatpush1.msra.mxu0 0.0
        %1022 = vmatprep.subr.mxu0 0.0
        %1023 = vmatpush1.msra.mxu0 0.0
        %1024 = vmatprep.subr.mxu0 0.0
        %1025 = vmatpush1.msra.mxu0 0.0
        %1026 = vmatprep.subr.mxu0 0.0
        %1027 = vmatpush1.msra.mxu0 0.0
        %1028 = vmatprep.subr.mxu0 0.0
        %1029 = vmatpush1.msra.mxu0 0.0
        %1030 = vmatprep.subr.mxu0 0.0
        %1031 = vmatpush1.msra.mxu0 0.0
        %1032 = vmatprep.subr.mxu0 0.0
        %1033 = vmatpush1.msra.mxu0 0.0
        %1034 = vmatprep.subr.mxu0 0.0
        %1035 = vmatpush1.msra.mxu0 0.0
        %1036 = vmatprep.subr.mxu0 0.0
        %1037 = vmatpush1.msra.mxu0 0.0
        %1038 = vmatprep.subr.mxu0 0.0
        %1039 = vmatpush1.msra.mxu0 0.0
        %1040 = vmatprep.subr.mxu0 0.0
        %1041 = vmatpush1.msra.mxu0 0.0
        %1042 = vmatprep.mubr.f32.mxu0 0.0
        %1043 = vmatmul.mubr.f32.gmra.mrb[0].mxu0 %v976
        %v1044 = vpop.f32.mrb[0].mxu0
        %v1045 = vadd.f32 0.0, %v1044
        %v1046 = vpop.f32.mrb[0].mxu0
        %1047 = vdwg.mxu0
        %v1048 = vld [vmem:[#allocation2] sm:$0xff]
        %v1049 = vld [vmem:[%s540] sm:$0xff]
        %v1051 = vsel %vm887, %v1045, 0
        %1053 = vmatprep.subr.mxu0 0.0
        %1054 = vmatpush1.msra.mxu0 %v1049
        %1055 = vmatprep.subr.mxu0 0.0
        %1056 = vmatpush1.msra.mxu0 0.0
        %1057 = vmatprep.subr.mxu0 0.0
        %1058 = vmatpush1.msra.mxu0 0.0
        %1059 = vmatprep.subr.mxu0 0.0
        %1060 = vmatpush1.msra.mxu0 0.0
        %1061 = vmatprep.subr.mxu0 0.0
        %1062 = vmatpush1.msra.mxu0 0.0
        %1063 = vmatprep.subr.mxu0 0.0
        %1064 = vmatpush1.msra.mxu0 0.0
        %1065 = vmatprep.subr.mxu0 0.0
        %1066 = vmatpush1.msra.mxu0 0.0
        %1067 = vmatprep.subr.mxu0 0.0
        %1068 = vmatpush1.msra.mxu0 0.0
        %1069 = vmatprep.subr.mxu0 0.0
        %1070 = vmatpush1.msra.mxu0 0.0
        %1071 = vmatprep.subr.mxu0 0.0
        %1072 = vmatpush1.msra.mxu0 0.0
        %1073 = vmatprep.subr.mxu0 0.0
        %1074 = vmatpush1.msra.mxu0 0.0
        %1075 = vmatprep.subr.mxu0 0.0
        %1076 = vmatpush1.msra.mxu0 0.0
        %1077 = vmatprep.subr.mxu0 0.0
        %1078 = vmatpush1.msra.mxu0 0.0
        %1079 = vmatprep.subr.mxu0 0.0
        %1080 = vmatpush1.msra.mxu0 0.0
        %1081 = vmatprep.subr.mxu0 0.0
        %1082 = vmatpush1.msra.mxu0 0.0
        %1083 = vmatprep.subr.mxu0 0.0
        %1084 = vmatpush1.msra.mxu0 0.0
        %1085 = vmatprep.subr.mxu0 0.0
        %1086 = vmatpush1.msra.mxu0 0.0
        %1087 = vmatprep.subr.mxu0 0.0
        %1088 = vmatpush1.msra.mxu0 0.0
        %1089 = vmatprep.subr.mxu0 0.0
        %1090 = vmatpush1.msra.mxu0 0.0
        %1091 = vmatprep.subr.mxu0 0.0
        %1092 = vmatpush1.msra.mxu0 0.0
        %1093 = vmatprep.subr.mxu0 0.0
        %1094 = vmatpush1.msra.mxu0 0.0
        %1095 = vmatprep.subr.mxu0 0.0
        %1096 = vmatpush1.msra.mxu0 0.0
        %1097 = vmatprep.subr.mxu0 0.0
        %1098 = vmatpush1.msra.mxu0 0.0
        %1099 = vmatprep.subr.mxu0 0.0
        %1100 = vmatpush1.msra.mxu0 0.0
        %1101 = vmatprep.subr.mxu0 0.0
        %1102 = vmatpush1.msra.mxu0 0.0
        %1103 = vmatprep.subr.mxu0 0.0
        %1104 = vmatpush1.msra.mxu0 0.0
        %1105 = vmatprep.subr.mxu0 0.0
        %1106 = vmatpush1.msra.mxu0 0.0
        %1107 = vmatprep.subr.mxu0 0.0
        %1108 = vmatpush1.msra.mxu0 0.0
        %1109 = vmatprep.subr.mxu0 0.0
        %1110 = vmatpush1.msra.mxu0 0.0
        %1111 = vmatprep.subr.mxu0 0.0
        %1112 = vmatpush1.msra.mxu0 0.0
        %1113 = vmatprep.subr.mxu0 0.0
        %1114 = vmatpush1.msra.mxu0 0.0
        %1115 = vmatprep.subr.mxu0 0.0
        %1116 = vmatpush1.msra.mxu0 0.0
        %1117 = vmatprep.mubr.f32.mxu0 0.0
        %1118 = vmatmul.mubr.f32.gmra.mrb[0].mxu0 %v1051
        %v1119 = vpop.f32.mrb[0].mxu0
        %v1120 = vadd.f32 0.0, %v1119
        %v1121 = vpop.f32.mrb[0].mxu0
        %1122 = vdwg.mxu0
        %v1123 = vadd.f32 %v1048, %v1120
        %1124 = vst.msk [vmem:[#allocation2] sm:$0xff] %vm644, %v1123
        %p1125 = scmp.eq.s32.totalorder %s43, 3
        // Predicated region
        $region89: #{tpu_custom_call.1} parent=59 // pred_check
          %p1126 = pneg %p1125
        $region90: #{tpu_custom_call.1} parent=59 // pred_check_branch
          %1128 = sbr.rel (%p1126) target = $region92
        $region91: #{tpu_custom_call.1} parent=59 // pred_region
          %v1129 = vld [vmem:[#allocation2] sm:$0xff]
          %1130 = vst.msk [vmem:[%s610] sm:$0xff] %vm644, %v1129
        $region92: #{tpu_custom_call.1} parent=59 // pred_fallthru
          _
        %s1131 = sand.u32 %s322, 1
        %s1132 = scalar_lea.sflag [#allocation5], %s1131
        %s1133 = sand.u32 %s322, 1
        %s1134 = smul.addr %s1133, 8
        %s1135 = scalar_lea.vmem [#allocation14], %s1134
        // Predicated region
        $region93: #{tpu_custom_call.1} parent=59 // pred_check
          %p1136 = pneg %p332
        $region94: #{tpu_custom_call.1} parent=59 // pred_check_branch
          %1138 = sbr.rel (%p1136) target = $region96
        $region95: #{tpu_custom_call.1} parent=59 // pred_region
          %s1140 = ssub.s32 128, 128
          %1141 = vsyncadd %s1132, %s1140
          %s1142 = sadd.s32 %s42, %s41
          %s1143 = smul.addr %s1142, 128
          %s1144 = scalar_lea.hbm %s10, %s1143
          %s1146 = sshll.u32 %s1135, 4
          %s1147 = int_to_ptr.vmem [resolvable:$true] %s1146
          %1149 = dma.vmem_to_hbm [thread:$0]  %s1147, 128, %s1144, %s1132
        $region96: #{tpu_custom_call.1} parent=59 // pred_fallthru
          _
      $region60: #{tpu_custom_call.1} parent=5 // pred_fallthru
        _
      %p1150 = scmp.le.s32.totalorder 2, %s31
      // Predicated region
      $region97: #{tpu_custom_call.1} parent=5 // pred_check
        %p1151 = pneg %p1150
      $region98: #{tpu_custom_call.1} parent=5 // pred_check_branch
        %1153 = sbr.rel (%p1151) target = $region100
      $region99: #{tpu_custom_call.1} parent=5 // pred_region
        %s1154 = ssub.s32 %s31, 2
        // Predicated region
        $region101: #{tpu_custom_call.1} parent=99 // pred_check
          %p1155 = pneg %p338
        $region102: #{tpu_custom_call.1} parent=99 // pred_check_branch
          %1157 = sbr.rel (%p1155) target = $region104
        $region103: #{tpu_custom_call.1} parent=99 // pred_region
          %s1158 = sand.u32 %s323, 1
          %s1159 = scalar_lea.sflag [#allocation5], %s1158
          %s1160 = sand.u32 %s323, 1
          %s1161 = smul.addr %s1160, 8
          %s1162 = scalar_lea.vmem [#allocation14], %s1161
          %1163 = dma.done %s1159, 128
        $region104: #{tpu_custom_call.1} parent=99 // pred_fallthru
          _
      $region100: #{tpu_custom_call.1} parent=5 // pred_fallthru
        _
    $region6: #{tpu_custom_call.1} parent=1 // loop_footer
      %s35 = sadd.s32 1, %s31
    $region7: #{tpu_custom_call.1} parent=1 // loop_footer_branch
      %30 = sbr.rel target = $region3
    $region8: #{tpu_custom_call.1} parent=1 // loop_exit
      _
    %1164 = vsyncpa [#allocation4], 1
    %s1165 = scalar_lea.sflag [#allocation4], 1
    %1166 = vsyncpa %s1165, 1
    %1167 = vsyncpa [#allocation7], 1
    %s1168 = scalar_lea.sflag [#allocation7], 1
    %1169 = vsyncpa %s1168, 1
    %1170 = vsyncpa [#allocation10], 1
    %s1171 = scalar_lea.sflag [#allocation10], 1
    %1172 = vsyncpa %s1171, 1
    %1173 = vsyncpa [#allocation13], 1
    %s1174 = scalar_lea.sflag [#allocation13], 1
    %1175 = vsyncpa %s1174, 1
    %1176 = vsyncpa [#allocation5], 1
    %s1177 = scalar_lea.sflag [#allocation5], 1
    %1178 = vsyncpa %s1177, 1

</llo_original>
